<compile_context>
chip_gen: v7x
topology: tpu7x:2x2x1
jax: 0.10.0
libtpu: 0.0.40
codegen_flags: <defaults>
</compile_context>

<pallas_src>
import functools

import jax
import jax.numpy as jnp
import numpy as np
from jax.experimental import pallas as pl
from jax.experimental.pallas import tpu as pltpu

# ----------------------------- model config ---------------------------------
IN_FEATURES = 2
IN_PAD = 8                     # coords padded to 8 rows: [x, y, 1, 0, 0, 0, 0, 0]
HIDDEN_FEATURES = 32
HIDDEN_LAYERS = 2              # number of hidden SineFiLM layers
OUT_FEATURES = 3
FIRST_OMEGA_0 = 30.0
HIDDEN_OMEGA_0 = 30.0
NUM_FILM_LAYERS = HIDDEN_LAYERS + 1   # first layer + hidden layers

_INV_TWO_PI = float(1.0 / (2.0 * np.pi))


# ---------------- bounded-domain sine (polynomial, fitted at import) ---------
def _fit_sin_turns_poly(n_terms=7, n_nodes=2048):
    """Odd polynomial p(r) = sum_k c_k r^(2k+1) ~ sin(2*pi*r) on r in [-0.5, 0.5].

    Fitted at Chebyshev nodes (near-minimax); degree 13 gives max error ~1e-8,
    well below the fp32 evaluation noise and the 2e-5 test tolerance.
    """
    k = np.arange(1, n_nodes + 1, dtype=np.float64)
    r = 0.5 * np.cos((2.0 * k - 1.0) * np.pi / (2.0 * n_nodes))
    design = np.stack([r ** (2 * i + 1) for i in range(n_terms)], axis=1)
    target = np.sin(2.0 * np.pi * r)
    coef, *_ = np.linalg.lstsq(design, target, rcond=None)
    return tuple(float(c) for c in coef)


_SIN_TURNS_COEFFS = _fit_sin_turns_poly()


def _sin_turns(y):
    """sin(2*pi*y) for moderately bounded |y| (here |y| <~ 16).

    Range reduction:  r = y - floor(y + 0.5)  in [-0.5, 0.5], then a degree-13
    odd polynomial evaluated by Horner in r^2. Pure VPU adds/muls + one floor —
    no transcendental-unit dependence and far fewer VALU ops than generic sin.
    """
    r = y - jnp.floor(y + 0.5)
    r2 = r * r
    c = _SIN_TURNS_COEFFS
    p = jnp.float32(c[-1])
    for cc in c[-2::-1]:
        p = p * r2 + jnp.float32(cc)
    return p * r


# ------------------------------- kernel -------------------------------------
def siren_film_kernel(x_ref, w0_ref, wh_ref, wf_ref, bf_ref, beta_ref, out_ref):
    """One tile of N points (feature-major) through the whole FiLM-SIREN net.

    Shapes (per tile):
      x_ref    : (IN_PAD, tile_n)   rows = [x, y, 1, 0...]; points on lane axis
      w0_ref   : (H, IN_PAD)        first-layer weight, gamma/(2*pi) folded in;
                                    column 2 holds the folded first-layer beta
      wh_ref   : (L_h, H, H)        hidden weights, gamma/(2*pi) folded in
      wf_ref   : (OUT, H)           final linear weight (out, in)
      bf_ref   : (OUT, 1)           final linear bias (column)
      beta_ref : (H, L_h)           folded hidden-layer shifts, in "turns"
      out_ref  : (OUT, tile_n)
    """
    # ---- first SineFiLM layer: single MXU matmul (beta carried by ones-row)
    y = jnp.dot(w0_ref[...], x_ref[...], preferred_element_type=jnp.float32)
    h = _sin_turns(y)

    # ---- hidden SineFiLM layers (static loop -> fully unrolled)
    for l in range(HIDDEN_LAYERS):
        y = jnp.dot(wh_ref[l], h, preferred_element_type=jnp.float32)
        h = _sin_turns(y + beta_ref[:, l:l + 1])

    # ---- final (outermost) linear layer
    out = jnp.dot(wf_ref[...], h, preferred_element_type=jnp.float32)
    out_ref[...] = (out + bf_ref[...]).astype(out_ref.dtype)


# ------------------------------ wrapper --------------------------------------
def _round_up(x, m):
    return ((x + m - 1) // m) * m


@functools.partial(jax.jit, static_argnames=("tile_n",))
def siren_film_forward(coords, params, scale, shift, tile_n=8192):
    """coords: (N, IN); scale/shift: (L, H); returns (N, OUT)."""
    n = coords.shape[0]
    w0, b0, wh, bh, wf, bf = params       # PyTorch (out, in) layout

    # --- fold omega_0 * scale (and the 1/(2*pi) range reduction) into the
    #     weight matrices; fold bias/shift into per-layer beta (in "turns").
    g0 = (FIRST_OMEGA_0 * scale[0]).astype(jnp.float32)                 # (H,)
    gh = (HIDDEN_OMEGA_0 * scale[1:]).astype(jnp.float32)               # (Lh, H)

    w0_fold = (g0[:, None] * w0) * _INV_TWO_PI                          # (H, IN)
    beta0 = (g0 * b0 + shift[0]) * _INV_TWO_PI                          # (H,)
    # Augment: columns [W'0 | beta0 | zeros] so the ones-row of the coords
    # carries the first-layer shift through the MXU.
    w0_aug = jnp.concatenate(
        [w0_fold, beta0[:, None],
         jnp.zeros((HIDDEN_FEATURES, IN_PAD - IN_FEATURES - 1), jnp.float32)],
        axis=1).astype(jnp.float32)                                     # (H, IN_PAD)

    wh_fold = (gh[:, :, None] * wh * _INV_TWO_PI).astype(jnp.float32)   # (Lh, H, H)
    beta_h = ((gh * bh + shift[1:]) * _INV_TWO_PI).astype(jnp.float32)  # (Lh, H)
    beta_h_t = beta_h.T                                                 # (H, Lh)

    bf_col = bf.reshape(OUT_FEATURES, 1).astype(jnp.float32)

    # --- pick a lane-tile: multiple of 128, <= tile_n, and >= 4 grid steps
    #     whenever possible (v7x has 2 TensorCores sharing the 'parallel' axis,
    #     so 4 steps gives each core >= 2 iterations of pipelining).
    quarter = _round_up(max(-(-n // 4), 1), 128)
    tile = max(128, min(tile_n, quarter))
    n_pad = _round_up(n, tile)
    grid = (n_pad // tile,)

    # --- feature-major coords, augmented to IN_PAD rows ([x, y, 1, 0...]),
    #     zero-padded along the point axis.
    coords_t = coords.T.astype(jnp.float32)                             # (IN, n)
    coords_aug = jnp.concatenate(
        [coords_t,
         jnp.ones((1, n), jnp.float32),
         jnp.zeros((IN_PAD - IN_FEATURES - 1, n), jnp.float32)], axis=0)
    coords_aug = jnp.pad(coords_aug, ((0, 0), (0, n_pad - n)))          # (IN_PAD, n_pad)

    poly_ops = 4 + 2 * (len(_SIN_TURNS_COEFFS) - 1) + 1   # per-element sine cost
    cost = pl.CostEstimate(
        flops=n_pad * (2 * (IN_PAD * HIDDEN_FEATURES
                            + HIDDEN_LAYERS * HIDDEN_FEATURES * HIDDEN_FEATURES
                            + HIDDEN_FEATURES * OUT_FEATURES)
                       + NUM_FILM_LAYERS * HIDDEN_FEATURES * poly_ops),
        transcendentals=0,
        bytes_accessed=4 * n_pad * (IN_PAD + OUT_FEATURES),
    )

    out_t = pl.pallas_call(
        siren_film_kernel,
        out_shape=jax.ShapeDtypeStruct((OUT_FEATURES, n_pad), jnp.float32),
        grid_spec=pltpu.PrefetchScalarGridSpec(
            num_scalar_prefetch=0,
            grid=grid,
            in_specs=[
                pl.BlockSpec((IN_PAD, tile), lambda i: (0, i)),
                pl.BlockSpec((HIDDEN_FEATURES, IN_PAD), lambda i: (0, 0)),
                pl.BlockSpec((HIDDEN_LAYERS, HIDDEN_FEATURES, HIDDEN_FEATURES),
                             lambda i: (0, 0, 0)),
                pl.BlockSpec((OUT_FEATURES, HIDDEN_FEATURES), lambda i: (0, 0)),
                pl.BlockSpec((OUT_FEATURES, 1), lambda i: (0, 0)),
                pl.BlockSpec((HIDDEN_FEATURES, HIDDEN_LAYERS), lambda i: (0, 0)),
            ],
            out_specs=pl.BlockSpec((OUT_FEATURES, tile), lambda i: (0, i)),
        ),
        compiler_params=pltpu.CompilerParams(
            dimension_semantics=("parallel",),
            vmem_limit_bytes=32 * 1024 * 1024),
        cost_estimate=cost,
    )(coords_aug, w0_aug, wh_fold, wf.astype(jnp.float32), bf_col, beta_h_t)

    # drop padding, back to (N, OUT) row-major
    return out_t[:, :n].T.astype(coords.dtype)


# ---------------------- deterministic parameter init -------------------------
def init_params(key):
    """SIREN init scheme, weights in PyTorch (out_features, in_features) layout."""
    ks = jax.random.split(key, 6)

    w0 = jax.random.uniform(ks[0], (HIDDEN_FEATURES, IN_FEATURES),
                            minval=-1.0 / IN_FEATURES,
                            maxval=1.0 / IN_FEATURES, dtype=jnp.float32)
    b0 = jax.random.uniform(ks[1], (HIDDEN_FEATURES,),
                            minval=-1.0 / np.sqrt(IN_FEATURES),
                            maxval=1.0 / np.sqrt(IN_FEATURES), dtype=jnp.float32)

    lim_h = np.sqrt(6.0 / HIDDEN_FEATURES) / HIDDEN_OMEGA_0
    wh = jax.random.uniform(ks[2],
                            (HIDDEN_LAYERS, HIDDEN_FEATURES, HIDDEN_FEATURES),
                            minval=-lim_h, maxval=lim_h, dtype=jnp.float32)
    bh = jax.random.uniform(ks[3], (HIDDEN_LAYERS, HIDDEN_FEATURES),
                            minval=-1.0 / np.sqrt(HIDDEN_FEATURES),
                            maxval=1.0 / np.sqrt(HIDDEN_FEATURES),
                            dtype=jnp.float32)

    wf = jax.random.uniform(ks[4], (OUT_FEATURES, HIDDEN_FEATURES),
                            minval=-lim_h, maxval=lim_h, dtype=jnp.float32)
    bf = jax.random.uniform(ks[5], (OUT_FEATURES,),
                            minval=-1.0 / np.sqrt(HIDDEN_FEATURES),
                            maxval=1.0 / np.sqrt(HIDDEN_FEATURES),
                            dtype=jnp.float32)
    return (w0, b0, wh, bh, wf, bf)


# ---------------------------- pure-JAX reference ------------------------------
def siren_film_reference(coords, params, scale, shift):
    w0, b0, wh, bh, wf, bf = params
    x = jnp.sin(FIRST_OMEGA_0 * (coords @ w0.T + b0) * scale[0] + shift[0])
    for l in range(HIDDEN_LAYERS):
        x = jnp.sin(HIDDEN_OMEGA_0 * (x @ wh[l].T + bh[l]) * scale[l + 1]
                    + shift[l + 1])
    return x @ wf.T + bf


# --------------------------------- main --------------------------------------
if __name__ == "__main__":
    key = jax.random.PRNGKey(0)
    k_params, k_coords, k_scale, k_shift = jax.random.split(key, 4)

    N = 1000  # deliberately NOT a multiple of 128 to exercise padding/remainder
    params = init_params(k_params)
    coords = jax.random.uniform(k_coords, (N, IN_FEATURES),
                                minval=-1.0, maxval=1.0, dtype=jnp.float32)
    scale = 1.0 + 0.1 * jax.random.normal(
        k_scale, (NUM_FILM_LAYERS, HIDDEN_FEATURES), dtype=jnp.float32)
    shift = 0.1 * jax.random.normal(
        k_shift, (NUM_FILM_LAYERS, HIDDEN_FEATURES), dtype=jnp.float32)

    out = siren_film_forward(coords, params, scale, shift)
    out = jax.block_until_ready(out)

    ref = siren_film_reference(coords, params, scale, shift)
    np.testing.assert_allclose(np.asarray(out), np.asarray(ref),
                               rtol=2e-5, atol=2e-5)
    print("KERNEL_OK")
</pallas_src>

<mosaic_0001>
module attributes {stable_mosaic.version = 11 : i64} {
  func.func @siren_film_kernel(%arg0: i32, %arg1: memref<8x256xf32, #tpu.memory_space<vmem>>, %arg2: memref<32x8xf32, #tpu.memory_space<vmem>>, %arg3: memref<2x32x32xf32, #tpu.memory_space<vmem>>, %arg4: memref<3x32xf32, #tpu.memory_space<vmem>>, %arg5: memref<3x1xf32, #tpu.memory_space<vmem>>, %arg6: memref<32x2xf32, #tpu.memory_space<vmem>>, %arg7: memref<3x256xf32, #tpu.memory_space<vmem>>) attributes {dimension_semantics = [#tpu.dimension_semantics<parallel>], iteration_bounds = array<i64: 4>, scalar_prefetch = 0 : i64, scratch_operands = 0 : i64, tpu.core_type = #tpu.core_type<tc>, window_params = [{transform_indices = @transform_0, window_bounds = array<i64: 8, 256>}, {pipeline_mode = #tpu.pipeline_mode<synchronous>, transform_indices = @transform_1, window_bounds = array<i64: 32, 8>}, {pipeline_mode = #tpu.pipeline_mode<synchronous>, transform_indices = @transform_2, window_bounds = array<i64: 2, 32, 32>}, {pipeline_mode = #tpu.pipeline_mode<synchronous>, transform_indices = @transform_3, window_bounds = array<i64: 3, 32>}, {pipeline_mode = #tpu.pipeline_mode<synchronous>, transform_indices = @transform_4, window_bounds = array<i64: 3, 1>}, {pipeline_mode = #tpu.pipeline_mode<synchronous>, transform_indices = @transform_5, window_bounds = array<i64: 32, 2>}, {transform_indices = @transform_6, window_bounds = array<i64: 3, 256>}]} {
    %c0 = arith.constant 0 : index
    %c0_0 = arith.constant 0 : index
    %0 = vector.load %arg2[%c0, %c0_0] : memref<32x8xf32, #tpu.memory_space<vmem>>, vector<32x8xf32>
    %c0_1 = arith.constant 0 : index
    %c0_2 = arith.constant 0 : index
    %1 = vector.load %arg1[%c0_1, %c0_2] : memref<8x256xf32, #tpu.memory_space<vmem>>, vector<8x256xf32>
    %cst = arith.constant dense<0.000000e+00> : vector<32x256xf32>
    %2 = tpu.matmul %0, %1, %cst {dimension_numbers = #tpu.dot_dimension_numbers<[1], [0], [0], [1], [0, 0, 1, 1], [], []>} : vector<32x8xf32>, vector<8x256xf32>, vector<32x256xf32> -> vector<32x256xf32>
    %cst_3 = arith.constant 5.000000e-01 : f32
    %3 = vector.broadcast %cst_3 : f32 to vector<32x256xf32>
    %4 = arith.addf %2, %3 : vector<32x256xf32>
    %5 = math.floor %4 : vector<32x256xf32>
    %6 = arith.subf %2, %5 : vector<32x256xf32>
    %7 = arith.mulf %6, %6 : vector<32x256xf32>
    %cst_4 = arith.constant 3.19933891 : f32
    %8 = vector.broadcast %cst_4 : f32 to vector<32x256xf32>
    %9 = arith.mulf %8, %7 : vector<32x256xf32>
    %cst_5 = arith.constant -14.8683224 : f32
    %10 = vector.broadcast %cst_5 : f32 to vector<32x256xf32>
    %11 = arith.addf %9, %10 : vector<32x256xf32>
    %12 = arith.mulf %11, %7 : vector<32x256xf32>
    %cst_6 = arith.constant 42.0160751 : f32
    %13 = vector.broadcast %cst_6 : f32 to vector<32x256xf32>
    %14 = arith.addf %12, %13 : vector<32x256xf32>
    %15 = arith.mulf %14, %7 : vector<32x256xf32>
    %cst_7 = arith.constant -76.701538 : f32
    %16 = vector.broadcast %cst_7 : f32 to vector<32x256xf32>
    %17 = arith.addf %15, %16 : vector<32x256xf32>
    %18 = arith.mulf %17, %7 : vector<32x256xf32>
    %cst_8 = arith.constant 81.6050262 : f32
    %19 = vector.broadcast %cst_8 : f32 to vector<32x256xf32>
    %20 = arith.addf %18, %19 : vector<32x256xf32>
    %21 = arith.mulf %20, %7 : vector<32x256xf32>
    %cst_9 = arith.constant -41.3416977 : f32
    %22 = vector.broadcast %cst_9 : f32 to vector<32x256xf32>
    %23 = arith.addf %21, %22 : vector<32x256xf32>
    %24 = arith.mulf %23, %7 : vector<32x256xf32>
    %cst_10 = arith.constant 6.28318548 : f32
    %25 = vector.broadcast %cst_10 : f32 to vector<32x256xf32>
    %26 = arith.addf %24, %25 : vector<32x256xf32>
    %27 = arith.mulf %26, %6 : vector<32x256xf32>
    %c0_11 = arith.constant 0 : index
    %c0_12 = arith.constant 0 : index
    %c0_13 = arith.constant 0 : index
    %28 = vector.load %arg3[%c0_11, %c0_12, %c0_13] : memref<2x32x32xf32, #tpu.memory_space<vmem>>, vector<1x32x32xf32>
    %29 = vector.shape_cast %28 : vector<1x32x32xf32> to vector<32x32xf32>
    %cst_14 = arith.constant dense<0.000000e+00> : vector<32x256xf32>
    %30 = tpu.matmul %29, %27, %cst_14 {dimension_numbers = #tpu.dot_dimension_numbers<[1], [0], [0], [1], [0, 0, 1, 1], [], []>} : vector<32x32xf32>, vector<32x256xf32>, vector<32x256xf32> -> vector<32x256xf32>
    %c0_15 = arith.constant 0 : index
    %c0_16 = arith.constant 0 : index
    %31 = vector.load %arg6[%c0_15, %c0_16] : memref<32x2xf32, #tpu.memory_space<vmem>>, vector<32x1xf32>
    %32 = vector.broadcast %31 : vector<32x1xf32> to vector<32x256xf32>
    %33 = arith.addf %30, %32 : vector<32x256xf32>
    %cst_17 = arith.constant 5.000000e-01 : f32
    %34 = vector.broadcast %cst_17 : f32 to vector<32x256xf32>
    %35 = arith.addf %33, %34 : vector<32x256xf32>
    %36 = math.floor %35 : vector<32x256xf32>
    %37 = arith.subf %33, %36 : vector<32x256xf32>
    %38 = arith.mulf %37, %37 : vector<32x256xf32>
    %cst_18 = arith.constant 3.19933891 : f32
    %39 = vector.broadcast %cst_18 : f32 to vector<32x256xf32>
    %40 = arith.mulf %39, %38 : vector<32x256xf32>
    %cst_19 = arith.constant -14.8683224 : f32
    %41 = vector.broadcast %cst_19 : f32 to vector<32x256xf32>
    %42 = arith.addf %40, %41 : vector<32x256xf32>
    %43 = arith.mulf %42, %38 : vector<32x256xf32>
    %cst_20 = arith.constant 42.0160751 : f32
    %44 = vector.broadcast %cst_20 : f32 to vector<32x256xf32>
    %45 = arith.addf %43, %44 : vector<32x256xf32>
    %46 = arith.mulf %45, %38 : vector<32x256xf32>
    %cst_21 = arith.constant -76.701538 : f32
    %47 = vector.broadcast %cst_21 : f32 to vector<32x256xf32>
    %48 = arith.addf %46, %47 : vector<32x256xf32>
    %49 = arith.mulf %48, %38 : vector<32x256xf32>
    %cst_22 = arith.constant 81.6050262 : f32
    %50 = vector.broadcast %cst_22 : f32 to vector<32x256xf32>
    %51 = arith.addf %49, %50 : vector<32x256xf32>
    %52 = arith.mulf %51, %38 : vector<32x256xf32>
    %cst_23 = arith.constant -41.3416977 : f32
    %53 = vector.broadcast %cst_23 : f32 to vector<32x256xf32>
    %54 = arith.addf %52, %53 : vector<32x256xf32>
    %55 = arith.mulf %54, %38 : vector<32x256xf32>
    %cst_24 = arith.constant 6.28318548 : f32
    %56 = vector.broadcast %cst_24 : f32 to vector<32x256xf32>
    %57 = arith.addf %55, %56 : vector<32x256xf32>
    %58 = arith.mulf %57, %37 : vector<32x256xf32>
    %c1 = arith.constant 1 : index
    %c0_25 = arith.constant 0 : index
    %c0_26 = arith.constant 0 : index
    %59 = vector.load %arg3[%c1, %c0_25, %c0_26] : memref<2x32x32xf32, #tpu.memory_space<vmem>>, vector<1x32x32xf32>
    %60 = vector.shape_cast %59 : vector<1x32x32xf32> to vector<32x32xf32>
    %cst_27 = arith.constant dense<0.000000e+00> : vector<32x256xf32>
    %61 = tpu.matmul %60, %58, %cst_27 {dimension_numbers = #tpu.dot_dimension_numbers<[1], [0], [0], [1], [0, 0, 1, 1], [], []>} : vector<32x32xf32>, vector<32x256xf32>, vector<32x256xf32> -> vector<32x256xf32>
    %c0_28 = arith.constant 0 : index
    %c1_29 = arith.constant 1 : index
    %62 = vector.load %arg6[%c0_28, %c1_29] : memref<32x2xf32, #tpu.memory_space<vmem>>, vector<32x1xf32>
    %63 = vector.broadcast %62 : vector<32x1xf32> to vector<32x256xf32>
    %64 = arith.addf %61, %63 : vector<32x256xf32>
    %cst_30 = arith.constant 5.000000e-01 : f32
    %65 = vector.broadcast %cst_30 : f32 to vector<32x256xf32>
    %66 = arith.addf %64, %65 : vector<32x256xf32>
    %67 = math.floor %66 : vector<32x256xf32>
    %68 = arith.subf %64, %67 : vector<32x256xf32>
    %69 = arith.mulf %68, %68 : vector<32x256xf32>
    %cst_31 = arith.constant 3.19933891 : f32
    %70 = vector.broadcast %cst_31 : f32 to vector<32x256xf32>
    %71 = arith.mulf %70, %69 : vector<32x256xf32>
    %cst_32 = arith.constant -14.8683224 : f32
    %72 = vector.broadcast %cst_32 : f32 to vector<32x256xf32>
    %73 = arith.addf %71, %72 : vector<32x256xf32>
    %74 = arith.mulf %73, %69 : vector<32x256xf32>
    %cst_33 = arith.constant 42.0160751 : f32
    %75 = vector.broadcast %cst_33 : f32 to vector<32x256xf32>
    %76 = arith.addf %74, %75 : vector<32x256xf32>
    %77 = arith.mulf %76, %69 : vector<32x256xf32>
    %cst_34 = arith.constant -76.701538 : f32
    %78 = vector.broadcast %cst_34 : f32 to vector<32x256xf32>
    %79 = arith.addf %77, %78 : vector<32x256xf32>
    %80 = arith.mulf %79, %69 : vector<32x256xf32>
    %cst_35 = arith.constant 81.6050262 : f32
    %81 = vector.broadcast %cst_35 : f32 to vector<32x256xf32>
    %82 = arith.addf %80, %81 : vector<32x256xf32>
    %83 = arith.mulf %82, %69 : vector<32x256xf32>
    %cst_36 = arith.constant -41.3416977 : f32
    %84 = vector.broadcast %cst_36 : f32 to vector<32x256xf32>
    %85 = arith.addf %83, %84 : vector<32x256xf32>
    %86 = arith.mulf %85, %69 : vector<32x256xf32>
    %cst_37 = arith.constant 6.28318548 : f32
    %87 = vector.broadcast %cst_37 : f32 to vector<32x256xf32>
    %88 = arith.addf %86, %87 : vector<32x256xf32>
    %89 = arith.mulf %88, %68 : vector<32x256xf32>
    %c0_38 = arith.constant 0 : index
    %c0_39 = arith.constant 0 : index
    %90 = vector.load %arg4[%c0_38, %c0_39] : memref<3x32xf32, #tpu.memory_space<vmem>>, vector<3x32xf32>
    %cst_40 = arith.constant dense<0.000000e+00> : vector<3x256xf32>
    %91 = tpu.matmul %90, %89, %cst_40 {dimension_numbers = #tpu.dot_dimension_numbers<[1], [0], [0], [1], [0, 0, 1, 1], [], []>} : vector<3x32xf32>, vector<32x256xf32>, vector<3x256xf32> -> vector<3x256xf32>
    %c0_41 = arith.constant 0 : index
    %c0_42 = arith.constant 0 : index
    %92 = vector.load %arg5[%c0_41, %c0_42] : memref<3x1xf32, #tpu.memory_space<vmem>>, vector<3x1xf32>
    %93 = vector.broadcast %92 : vector<3x1xf32> to vector<3x256xf32>
    %94 = arith.addf %91, %93 : vector<3x256xf32>
    %c0_43 = arith.constant 0 : index
    %c0_44 = arith.constant 0 : index
    %95 = vector.load %arg7[%c0_43, %c0_44] : memref<3x256xf32, #tpu.memory_space<vmem>>, vector<3x256xf32>
    tpu.vector_store %arg7[%c0_43, %c0_44], %94 {strides = array<i32>} : memref<3x256xf32, #tpu.memory_space<vmem>>, vector<3x256xf32>,
    return
  }
  func.func @transform_0(%arg0: i32) -> (i32, i32) {
    %c0_i32 = arith.constant 0 : i32
    %c0_i32_0 = arith.constant 0 : i32
    return %c0_i32, %arg0 : i32, i32
  }
  func.func @transform_1(%arg0: i32) -> (i32, i32) {
    %c0_i32 = arith.constant 0 : i32
    %c0_i32_0 = arith.constant 0 : i32
    %c0_i32_1 = arith.constant 0 : i32
    return %c0_i32, %c0_i32_0 : i32, i32
  }
  func.func @transform_2(%arg0: i32) -> (i32, i32, i32) {
    %c0_i32 = arith.constant 0 : i32
    %c0_i32_0 = arith.constant 0 : i32
    %c0_i32_1 = arith.constant 0 : i32
    %c0_i32_2 = arith.constant 0 : i32
    return %c0_i32, %c0_i32_0, %c0_i32_1 : i32, i32, i32
  }
  func.func @transform_3(%arg0: i32) -> (i32, i32) {
    %c0_i32 = arith.constant 0 : i32
    %c0_i32_0 = arith.constant 0 : i32
    %c0_i32_1 = arith.constant 0 : i32
    return %c0_i32, %c0_i32_0 : i32, i32
  }
  func.func @transform_4(%arg0: i32) -> (i32, i32) {
    %c0_i32 = arith.constant 0 : i32
    %c0_i32_0 = arith.constant 0 : i32
    %c0_i32_1 = arith.constant 0 : i32
    return %c0_i32, %c0_i32_0 : i32, i32
  }
  func.func @transform_5(%arg0: i32) -> (i32, i32) {
    %c0_i32 = arith.constant 0 : i32
    %c0_i32_0 = arith.constant 0 : i32
    %c0_i32_1 = arith.constant 0 : i32
    return %c0_i32, %c0_i32_0 : i32, i32
  }
  func.func @transform_6(%arg0: i32) -> (i32, i32) {
    %c0_i32 = arith.constant 0 : i32
    %c0_i32_0 = arith.constant 0 : i32
    return %c0_i32, %arg0 : i32, i32
  }
}

</mosaic_0001>

<llo_original>
// kernel: siren_film_forward.1
$region0: #{siren_film_forward.1}
  #allocation0 [shape = 'u32[]', space=smem, size = 0x4, offset = 0x4, fixed_abs, tag = 'smem constant byte address 0x4 - core index']
  #allocation1 [shape = 'u32[144,128]{1,0:T(1,128)}', space=vmem, size = 0x12000, scoped, tag = 'internal scratch']
  %s0 = inlined_call_operand.vmem [shape: f32[8,1024], index: 0, kind: input, shape index: {}]
  %s1 = inlined_call_operand.vmem [shape: f32[32,8], index: 1, kind: input, shape index: {}]
  %s2 = inlined_call_operand.vmem [shape: f32[2,32,32], index: 2, kind: input, shape index: {}]
  %s3 = inlined_call_operand.vmem [shape: f32[3,32], index: 3, kind: input, shape index: {}]
  %s4 = inlined_call_operand.vmem [shape: f32[3,1], index: 4, kind: input, shape index: {}]
  %s5 = inlined_call_operand.vmem [shape: f32[32,2], index: 5, kind: input, shape index: {}]
  %s6 = inlined_call_operand.vmem [shape: f32[3,1024], index: 6, kind: output, shape index: {}]
  %s7 = sld [smem:[#allocation0]]
  $region57: #{siren_film_forward.1} parent=0
    _
  %s9 = ssub.s32 1, %s7
  %s10 = scalar_select 0, %s9, %s7
  loop: start=0, step=1, limit=6
  $region2: #{siren_film_forward.1} parent=0 // loop_pre_header
    _
  $region3: #{siren_film_forward.1} parent=0 // loop_header
    %s12 = sphi 0, %s16
    %p13 = scmp.ge.s32.totalorder %s12, 6
    %s22 = sphi 0, %s24
    %s25 = sphi 0, %s22
    %s26 = sphi 0, %s25
    %s42 = sphi 0, %s26
    %s46 = sphi 0, %s46
    %s48 = sphi 0, %s46
    %s49 = sphi 0, %s48
    %s63 = sphi 0, %s49
    %s67 = sphi 0, %s67
    %s69 = sphi 0, %s67
    %s70 = sphi 0, %s69
    %s84 = sphi 0, %s70
    %s88 = sphi 0, %s88
    %s90 = sphi 0, %s88
    %s91 = sphi 0, %s90
    %s105 = sphi 0, %s91
    %s109 = sphi 0, %s109
    %s111 = sphi 0, %s109
    %s112 = sphi 0, %s111
    %s126 = sphi 0, %s112
    %s130 = sphi 0, %s130
    %s132 = sphi 0, %s130
    %s133 = sphi 0, %s132
    %s147 = sphi 0, %s133
    %s153 = sphi 0, %s155
    %s156 = sphi 0, %s153
    %s157 = sphi 0, %s156
    %s173 = sphi 0, %s157
  $region4: #{siren_film_forward.1} parent=0 // loop_header_branch
    %15 = sbr.rel (%p13) target = $region8
  $region5: #{siren_film_forward.1} parent=0 // loop_body
    %s17 = ssub.s32 %s12, 1
    %s18 = ssub.s32 %s12, 2
    %s19 = sadd.s32 %s12, 1
    %s20 = ssub.s32 %s12, %s19
    %p21 = scmp.eq.s32.totalorder %s20, 0
    %s23 = sadd.s32 %s22, 1
    %s24 = scalar_select %p21, %s22, %s23
    %p27 = pneg %p21
    %p28 = scmp.eq.s32.totalorder %s12, 3
    %p29 = por %p27, %p28
    %p30 = scmp.ne.s32.totalorder %s22, %s25
    %p31 = scmp.eq.s32.totalorder %s12, 0
    %p32 = por %p30, %p31
    %p33 = scmp.ne.s32.totalorder %s22, %s25
    %p34 = scmp.eq.s32.totalorder %s17, 3
    %p35 = por %p33, %p34
    %p36 = scmp.ne.s32.totalorder %s25, %s26
    %p37 = scmp.eq.s32.totalorder %s17, 0
    %p38 = por %p36, %p37
    %p39 = scmp.ne.s32.totalorder %s25, %s26
    %p40 = scmp.eq.s32.totalorder %s18, 3
    %p41 = por %p39, %p40
    %p43 = scmp.ne.s32.totalorder %s26, %s42
    %p44 = scmp.eq.s32.totalorder %s18, 0
    %p45 = por %p43, %p44
    %s47 = sadd.s32 %s46, 1
    %p50 = scmp.eq.s32.totalorder %s12, 3
    %p51 = scmp.ne.s32.totalorder %s46, %s48
    %p52 = scmp.eq.s32.totalorder %s12, 0
    %p53 = por %p51, %p52
    %p54 = scmp.ne.s32.totalorder %s46, %s48
    %p55 = scmp.eq.s32.totalorder %s17, 3
    %p56 = por %p54, %p55
    %p57 = scmp.ne.s32.totalorder %s48, %s49
    %p58 = scmp.eq.s32.totalorder %s17, 0
    %p59 = por %p57, %p58
    %p60 = scmp.ne.s32.totalorder %s48, %s49
    %p61 = scmp.eq.s32.totalorder %s18, 3
    %p62 = por %p60, %p61
    %p64 = scmp.ne.s32.totalorder %s49, %s63
    %p65 = scmp.eq.s32.totalorder %s18, 0
    %p66 = por %p64, %p65
    %s68 = sadd.s32 %s67, 1
    %p71 = scmp.eq.s32.totalorder %s12, 3
    %p72 = scmp.ne.s32.totalorder %s67, %s69
    %p73 = scmp.eq.s32.totalorder %s12, 0
    %p74 = por %p72, %p73
    %p75 = scmp.ne.s32.totalorder %s67, %s69
    %p76 = scmp.eq.s32.totalorder %s17, 3
    %p77 = por %p75, %p76
    %p78 = scmp.ne.s32.totalorder %s69, %s70
    %p79 = scmp.eq.s32.totalorder %s17, 0
    %p80 = por %p78, %p79
    %p81 = scmp.ne.s32.totalorder %s69, %s70
    %p82 = scmp.eq.s32.totalorder %s18, 3
    %p83 = por %p81, %p82
    %p85 = scmp.ne.s32.totalorder %s70, %s84
    %p86 = scmp.eq.s32.totalorder %s18, 0
    %p87 = por %p85, %p86
    %s89 = sadd.s32 %s88, 1
    %p92 = scmp.eq.s32.totalorder %s12, 3
    %p93 = scmp.ne.s32.totalorder %s88, %s90
    %p94 = scmp.eq.s32.totalorder %s12, 0
    %p95 = por %p93, %p94
    %p96 = scmp.ne.s32.totalorder %s88, %s90
    %p97 = scmp.eq.s32.totalorder %s17, 3
    %p98 = por %p96, %p97
    %p99 = scmp.ne.s32.totalorder %s90, %s91
    %p100 = scmp.eq.s32.totalorder %s17, 0
    %p101 = por %p99, %p100
    %p102 = scmp.ne.s32.totalorder %s90, %s91
    %p103 = scmp.eq.s32.totalorder %s18, 3
    %p104 = por %p102, %p103
    %p106 = scmp.ne.s32.totalorder %s91, %s105
    %p107 = scmp.eq.s32.totalorder %s18, 0
    %p108 = por %p106, %p107
    %s110 = sadd.s32 %s109, 1
    %p113 = scmp.eq.s32.totalorder %s12, 3
    %p114 = scmp.ne.s32.totalorder %s109, %s111
    %p115 = scmp.eq.s32.totalorder %s12, 0
    %p116 = por %p114, %p115
    %p117 = scmp.ne.s32.totalorder %s109, %s111
    %p118 = scmp.eq.s32.totalorder %s17, 3
    %p119 = por %p117, %p118
    %p120 = scmp.ne.s32.totalorder %s111, %s112
    %p121 = scmp.eq.s32.totalorder %s17, 0
    %p122 = por %p120, %p121
    %p123 = scmp.ne.s32.totalorder %s111, %s112
    %p124 = scmp.eq.s32.totalorder %s18, 3
    %p125 = por %p123, %p124
    %p127 = scmp.ne.s32.totalorder %s112, %s126
    %p128 = scmp.eq.s32.totalorder %s18, 0
    %p129 = por %p127, %p128
    %s131 = sadd.s32 %s130, 1
    %p134 = scmp.eq.s32.totalorder %s12, 3
    %p135 = scmp.ne.s32.totalorder %s130, %s132
    %p136 = scmp.eq.s32.totalorder %s12, 0
    %p137 = por %p135, %p136
    %p138 = scmp.ne.s32.totalorder %s130, %s132
    %p139 = scmp.eq.s32.totalorder %s17, 3
    %p140 = por %p138, %p139
    %p141 = scmp.ne.s32.totalorder %s132, %s133
    %p142 = scmp.eq.s32.totalorder %s17, 0
    %p143 = por %p141, %p142
    %p144 = scmp.ne.s32.totalorder %s132, %s133
    %p145 = scmp.eq.s32.totalorder %s18, 3
    %p146 = por %p144, %p145
    %p148 = scmp.ne.s32.totalorder %s133, %s147
    %p149 = scmp.eq.s32.totalorder %s18, 0
    %p150 = por %p148, %p149
    %s151 = ssub.s32 %s12, %s19
    %p152 = scmp.eq.s32.totalorder %s151, 0
    %s154 = sadd.s32 %s153, 1
    %s155 = scalar_select %p152, %s153, %s154
    %p158 = pneg %p152
    %p159 = scmp.eq.s32.totalorder %s12, 3
    %p160 = por %p158, %p159
    %p161 = scmp.ne.s32.totalorder %s153, %s156
    %p162 = scmp.eq.s32.totalorder %s12, 0
    %p163 = por %p161, %p162
    %p164 = scmp.ne.s32.totalorder %s153, %s156
    %p165 = scmp.eq.s32.totalorder %s17, 3
    %p166 = por %p164, %p165
    %p167 = scmp.ne.s32.totalorder %s156, %s157
    %p168 = scmp.eq.s32.totalorder %s17, 0
    %p169 = por %p167, %p168
    %p170 = scmp.ne.s32.totalorder %s156, %s157
    %p171 = scmp.eq.s32.totalorder %s18, 3
    %p172 = por %p170, %p171
    %p174 = scmp.ne.s32.totalorder %s157, %s173
    %p175 = scmp.eq.s32.totalorder %s18, 0
    %p176 = por %p174, %p175
    %p177 = scmp.le.s32.totalorder 1, %s12
    %p178 = scmp.lt.s32.totalorder %s12, 5
    %p179 = pnand %p177, %p178
    %p180 = pneg %p179
    // Predicated region
    $region9: #{siren_film_forward.1} parent=5 // pred_check
      _
    $region10: #{siren_film_forward.1} parent=5 // pred_check_branch
      %182 = sbr.rel (%p179) target = $region12
    $region11: #{siren_film_forward.1} parent=5 // pred_region
      %s183 = ssub.s32 %s12, 1
      // Predicated region
      $region13: #{siren_film_forward.1} parent=11 // pred_check
        %p184 = pneg %p59
      $region14: #{siren_film_forward.1} parent=11 // pred_check_branch
        %186 = sbr.rel (%p184) target = $region16
      $region15: #{siren_film_forward.1} parent=11 // pred_region
        _
      $region16: #{siren_film_forward.1} parent=11 // pred_fallthru
        _
      // Predicated region
      $region17: #{siren_film_forward.1} parent=11 // pred_check
        %p187 = pneg %p80
      $region18: #{siren_film_forward.1} parent=11 // pred_check_branch
        %189 = sbr.rel (%p187) target = $region20
      $region19: #{siren_film_forward.1} parent=11 // pred_region
        _
      $region20: #{siren_film_forward.1} parent=11 // pred_fallthru
        _
      // Predicated region
      $region21: #{siren_film_forward.1} parent=11 // pred_check
        %p190 = pneg %p101
      $region22: #{siren_film_forward.1} parent=11 // pred_check_branch
        %192 = sbr.rel (%p190) target = $region24
      $region23: #{siren_film_forward.1} parent=11 // pred_region
        _
      $region24: #{siren_film_forward.1} parent=11 // pred_fallthru
        _
      // Predicated region
      $region25: #{siren_film_forward.1} parent=11 // pred_check
        %p193 = pneg %p122
      $region26: #{siren_film_forward.1} parent=11 // pred_check_branch
        %195 = sbr.rel (%p193) target = $region28
      $region27: #{siren_film_forward.1} parent=11 // pred_region
        _
      $region28: #{siren_film_forward.1} parent=11 // pred_fallthru
        _
      // Predicated region
      $region29: #{siren_film_forward.1} parent=11 // pred_check
        %p196 = pneg %p143
      $region30: #{siren_film_forward.1} parent=11 // pred_check_branch
        %198 = sbr.rel (%p196) target = $region32
      $region31: #{siren_film_forward.1} parent=11 // pred_region
        _
      $region32: #{siren_film_forward.1} parent=11 // pred_fallthru
        _
    $region12: #{siren_film_forward.1} parent=5 // pred_fallthru
      _
    %p199 = scmp.lt.s32.totalorder %s12, 4
    // Predicated region
    $region33: #{siren_film_forward.1} parent=5 // pred_check
      %p200 = pneg %p199
    $region34: #{siren_film_forward.1} parent=5 // pred_check_branch
      %202 = sbr.rel (%p200) target = $region36
    $region35: #{siren_film_forward.1} parent=5 // pred_region
      // Predicated region
      $region37: #{siren_film_forward.1} parent=35 // pred_check
        %p203 = pneg %p32
      $region38: #{siren_film_forward.1} parent=35 // pred_check_branch
        %205 = sbr.rel (%p203) target = $region40
      $region39: #{siren_film_forward.1} parent=35 // pred_region
        %s206 = smul.u32 2, %s12
        %p207 = scmp.lt.s32.totalorder %s206, 7
        %s208 = scalar_select %p207, %s206, 7
        %s209 = smul.addr %s208, 8
        %s210 = scalar_lea.vmem %s0, %s209
        %s211 = smul.u32 2, %s12
      $region40: #{siren_film_forward.1} parent=35 // pred_fallthru
        _
    $region36: #{siren_film_forward.1} parent=5 // pred_fallthru
      _
    %p212 = scmp.le.s32.totalorder 1, %s12
    %p213 = scmp.lt.s32.totalorder %s12, 5
    %p214 = pnand %p212, %p213
    %p215 = pneg %p214
    // Predicated region
    $region41: #{siren_film_forward.1} parent=5 // pred_check
      _
    $region42: #{siren_film_forward.1} parent=5 // pred_check_branch
      %217 = sbr.rel (%p214) target = $region44
    $region43: #{siren_film_forward.1} parent=5 // pred_region
      %s218 = ssub.s32 %s12, 1
      %s219 = smul.u32 2, %s17
      %p220 = scmp.lt.s32.totalorder %s219, 7
      %s221 = scalar_select %p220, %s219, 7
      %s222 = smul.addr %s221, 8
      %s223 = scalar_lea.vmem %s0, %s222
      %p224 = pneg %p38
      %p225 = pneg %p35
      %p226 = pneg %p59
      %p227 = pneg %p56
      %p228 = pneg %p80
      %p229 = pneg %p77
      %p230 = pneg %p101
      %p231 = pneg %p98
      %p232 = pneg %p122
      %p233 = pneg %p119
      %p234 = pneg %p143
      %p235 = pneg %p140
      %p236 = pneg %p169
      %p237 = pneg %p166
      %s238 = smul.u32 2, %s17
      %p239 = scmp.lt.s32.totalorder %s238, 7
      %s240 = scalar_select %p239, %s238, 7
      %s241 = smul.addr %s240, 4
      %s242 = scalar_lea.vmem %s6, %s241
      %s243 = smul.u32 2, %s17
      %p244 = scmp.lt.s32.totalorder %s243, 7
      %s245 = scalar_select %p244, %s243, 7
      %s246 = smul.addr %s245, 8
      %s247 = scalar_lea.vmem %s0, %s246
      %s248 = smul.u32 2, %s17
      %s249 = smul.u32 2, %s17
      %p250 = scmp.lt.s32.totalorder %s249, 7
      %s251 = scalar_select %p250, %s249, 7
      %s252 = smul.addr %s251, 4
      %s253 = scalar_lea.vmem %s6, %s252
      %s254 = smul.u32 2, %s17
      %v255 = vld [vmem:[%s1] sm:$0xff]
      %v256 = vld [vmem:[%s1 + $0x8] sm:$0xff]
      %v257 = vld [vmem:[%s1 + $0x10] sm:$0xff]
      %v258 = vld [vmem:[%s1 + $0x18] sm:$0xff]
      %v259 = vld [vmem:[%s247] sm:$0xff]
      %v260 = vld [vmem:[%s247 + $0x8] sm:$0xff]
      %vm261 = vcmask 64512
      %v263 = vsel %vm261, %v255, 0
      %v266 = vsel %vm261, %v256, 0
      %v269 = vsel %vm261, %v257, 0
      %v272 = vsel %vm261, %v258, 0
      %274 = vmatprep.subr.mxu0 %v260
      %275 = vmatpush1.msra.mxu0 %v259
      %276 = vmatprep.subr.mxu0 0.0
      %277 = vmatpush1.msra.mxu0 0.0
      %278 = vmatprep.subr.mxu0 0.0
      %279 = vmatpush1.msra.mxu0 0.0
      %280 = vmatprep.subr.mxu0 0.0
      %281 = vmatpush1.msra.mxu0 0.0
      %282 = vmatprep.subr.mxu0 0.0
      %283 = vmatpush1.msra.mxu0 0.0
      %284 = vmatprep.subr.mxu0 0.0
      %285 = vmatpush1.msra.mxu0 0.0
      %286 = vmatprep.subr.mxu0 0.0
      %287 = vmatpush1.msra.mxu0 0.0
      %288 = vmatprep.subr.mxu0 0.0
      %289 = vmatpush1.msra.mxu0 0.0
      %290 = vmatprep.subr.mxu0 0.0
      %291 = vmatpush1.msra.mxu0 0.0
      %292 = vmatprep.subr.mxu0 0.0
      %293 = vmatpush1.msra.mxu0 0.0
      %294 = vmatprep.subr.mxu0 0.0
      %295 = vmatpush1.msra.mxu0 0.0
      %296 = vmatprep.subr.mxu0 0.0
      %297 = vmatpush1.msra.mxu0 0.0
      %298 = vmatprep.subr.mxu0 0.0
      %299 = vmatpush1.msra.mxu0 0.0
      %300 = vmatprep.subr.mxu0 0.0
      %301 = vmatpush1.msra.mxu0 0.0
      %302 = vmatprep.subr.mxu0 0.0
      %303 = vmatpush1.msra.mxu0 0.0
      %304 = vmatprep.subr.mxu0 0.0
      %305 = vmatpush1.msra.mxu0 0.0
      %306 = vmatprep.subr.mxu0 0.0
      %307 = vmatpush1.msra.mxu0 0.0
      %308 = vmatprep.subr.mxu0 0.0
      %309 = vmatpush1.msra.mxu0 0.0
      %310 = vmatprep.subr.mxu0 0.0
      %311 = vmatpush1.msra.mxu0 0.0
      %312 = vmatprep.subr.mxu0 0.0
      %313 = vmatpush1.msra.mxu0 0.0
      %314 = vmatprep.subr.mxu0 0.0
      %315 = vmatpush1.msra.mxu0 0.0
      %316 = vmatprep.subr.mxu0 0.0
      %317 = vmatpush1.msra.mxu0 0.0
      %318 = vmatprep.subr.mxu0 0.0
      %319 = vmatpush1.msra.mxu0 0.0
      %320 = vmatprep.subr.mxu0 0.0
      %321 = vmatpush1.msra.mxu0 0.0
      %322 = vmatprep.subr.mxu0 0.0
      %323 = vmatpush1.msra.mxu0 0.0
      %324 = vmatprep.subr.mxu0 0.0
      %325 = vmatpush1.msra.mxu0 0.0
      %326 = vmatprep.subr.mxu0 0.0
      %327 = vmatpush1.msra.mxu0 0.0
      %328 = vmatprep.subr.mxu0 0.0
      %329 = vmatpush1.msra.mxu0 0.0
      %330 = vmatprep.subr.mxu0 0.0
      %331 = vmatpush1.msra.mxu0 0.0
      %332 = vmatprep.subr.mxu0 0.0
      %333 = vmatpush1.msra.mxu0 0.0
      %334 = vmatprep.subr.mxu0 0.0
      %335 = vmatpush1.msra.mxu0 0.0
      %336 = vmatprep.subr.mxu0 0.0
      %337 = vmatpush1.msra.mxu0 0.0
      %338 = vmatprep.mubr.f32.mxu0 0.0
      %339 = vmatmul.mubr.f32.gmra.mrb[0].mxu0 %v263
      %v340 = vpop.f32.mrb[0].mxu0
      %v341 = vadd.f32 0.0, %v340
      %v342 = vpop.f32.mrb[0].mxu0
      %v343 = vadd.f32 0.0, %v342
      %344 = vmatprep.mubr.f32.mxu0 0.0
      %345 = vmatmul.mubr.f32.gmra.mrb[0].mxu0 %v266
      %v346 = vpop.f32.mrb[0].mxu0
      %v347 = vadd.f32 0.0, %v346
      %v348 = vpop.f32.mrb[0].mxu0
      %v349 = vadd.f32 0.0, %v348
      %350 = vmatprep.mubr.f32.mxu0 0.0
      %351 = vmatmul.mubr.f32.gmra.mrb[0].mxu0 %v269
      %v352 = vpop.f32.mrb[0].mxu0
      %v353 = vadd.f32 0.0, %v352
      %v354 = vpop.f32.mrb[0].mxu0
      %v355 = vadd.f32 0.0, %v354
      %356 = vmatprep.mubr.f32.mxu0 0.0
      %357 = vmatmul.mubr.f32.gmra.mrb[0].mxu0 %v272
      %v358 = vpop.f32.mrb[0].mxu0
      %v359 = vadd.f32 0.0, %v358
      %v360 = vpop.f32.mrb[0].mxu0
      %v361 = vadd.f32 0.0, %v360
      %362 = vdwg.mxu0
      %v363 = vadd.f32 %v341, 0.5
      %v364 = vadd.f32 %v343, 0.5
      %v365 = vadd.f32 %v347, 0.5
      %v366 = vadd.f32 %v349, 0.5
      %v367 = vadd.f32 %v353, 0.5
      %v368 = vadd.f32 %v355, 0.5
      %v369 = vadd.f32 %v359, 0.5
      %v370 = vadd.f32 %v361, 0.5
      %v371 = vfloor.f32 %v363
      %v372 = vfloor.f32 %v364
      %v373 = vfloor.f32 %v365
      %v374 = vfloor.f32 %v366
      %v375 = vfloor.f32 %v367
      %v376 = vfloor.f32 %v368
      %v377 = vfloor.f32 %v369
      %v378 = vfloor.f32 %v370
      %v379 = vsub.f32 %v341, %v371
      %v380 = vsub.f32 %v343, %v372
      %v381 = vsub.f32 %v347, %v373
      %v382 = vsub.f32 %v349, %v374
      %v383 = vsub.f32 %v353, %v375
      %v384 = vsub.f32 %v355, %v376
      %v385 = vsub.f32 %v359, %v377
      %v386 = vsub.f32 %v361, %v378
      %v387 = vmul.f32 %v379, %v379
      %v388 = vmul.f32 %v380, %v380
      %v389 = vmul.f32 %v381, %v381
      %v390 = vmul.f32 %v382, %v382
      %v391 = vmul.f32 %v383, %v383
      %v392 = vmul.f32 %v384, %v384
      %v393 = vmul.f32 %v385, %v385
      %v394 = vmul.f32 %v386, %v386
      %v395 = vmul.f32 %v387, 3.199339
      %v396 = vmul.f32 %v388, 3.199339
      %v397 = vmul.f32 %v389, 3.199339
      %v398 = vmul.f32 %v390, 3.199339
      %v399 = vmul.f32 %v391, 3.199339
      %v400 = vmul.f32 %v392, 3.199339
      %v401 = vmul.f32 %v393, 3.199339
      %v402 = vmul.f32 %v394, 3.199339
      %v403 = vadd.f32 %v395, -14.868322
      %v404 = vadd.f32 %v396, -14.868322
      %v405 = vadd.f32 %v397, -14.868322
      %v406 = vadd.f32 %v398, -14.868322
      %v407 = vadd.f32 %v399, -14.868322
      %v408 = vadd.f32 %v400, -14.868322
      %v409 = vadd.f32 %v401, -14.868322
      %v410 = vadd.f32 %v402, -14.868322
      %v411 = vmul.f32 %v403, %v387
      %v412 = vmul.f32 %v404, %v388
      %v413 = vmul.f32 %v405, %v389
      %v414 = vmul.f32 %v406, %v390
      %v415 = vmul.f32 %v407, %v391
      %v416 = vmul.f32 %v408, %v392
      %v417 = vmul.f32 %v409, %v393
      %v418 = vmul.f32 %v410, %v394
      %v419 = vadd.f32 %v411, 42.016075
      %v420 = vadd.f32 %v412, 42.016075
      %v421 = vadd.f32 %v413, 42.016075
      %v422 = vadd.f32 %v414, 42.016075
      %v423 = vadd.f32 %v415, 42.016075
      %v424 = vadd.f32 %v416, 42.016075
      %v425 = vadd.f32 %v417, 42.016075
      %v426 = vadd.f32 %v418, 42.016075
      %v427 = vmul.f32 %v419, %v387
      %v428 = vmul.f32 %v420, %v388
      %v429 = vmul.f32 %v421, %v389
      %v430 = vmul.f32 %v422, %v390
      %v431 = vmul.f32 %v423, %v391
      %v432 = vmul.f32 %v424, %v392
      %v433 = vmul.f32 %v425, %v393
      %v434 = vmul.f32 %v426, %v394
      %v435 = vadd.f32 %v427, -76.70154
      %v436 = vadd.f32 %v428, -76.70154
      %v437 = vadd.f32 %v429, -76.70154
      %v438 = vadd.f32 %v430, -76.70154
      %v439 = vadd.f32 %v431, -76.70154
      %v440 = vadd.f32 %v432, -76.70154
      %v441 = vadd.f32 %v433, -76.70154
      %v442 = vadd.f32 %v434, -76.70154
      %v443 = vmul.f32 %v435, %v387
      %v444 = vmul.f32 %v436, %v388
      %v445 = vmul.f32 %v437, %v389
      %v446 = vmul.f32 %v438, %v390
      %v447 = vmul.f32 %v439, %v391
      %v448 = vmul.f32 %v440, %v392
      %v449 = vmul.f32 %v441, %v393
      %v450 = vmul.f32 %v442, %v394
      %v451 = vadd.f32 %v443, 81.60503
      %v452 = vadd.f32 %v444, 81.60503
      %v453 = vadd.f32 %v445, 81.60503
      %v454 = vadd.f32 %v446, 81.60503
      %v455 = vadd.f32 %v447, 81.60503
      %v456 = vadd.f32 %v448, 81.60503
      %v457 = vadd.f32 %v449, 81.60503
      %v458 = vadd.f32 %v450, 81.60503
      %v459 = vmul.f32 %v451, %v387
      %v460 = vmul.f32 %v452, %v388
      %v461 = vmul.f32 %v453, %v389
      %v462 = vmul.f32 %v454, %v390
      %v463 = vmul.f32 %v455, %v391
      %v464 = vmul.f32 %v456, %v392
      %v465 = vmul.f32 %v457, %v393
      %v466 = vmul.f32 %v458, %v394
      %v467 = vadd.f32 %v459, -41.341698
      %v468 = vadd.f32 %v460, -41.341698
      %v469 = vadd.f32 %v461, -41.341698
      %v470 = vadd.f32 %v462, -41.341698
      %v471 = vadd.f32 %v463, -41.341698
      %v472 = vadd.f32 %v464, -41.341698
      %v473 = vadd.f32 %v465, -41.341698
      %v474 = vadd.f32 %v466, -41.341698
      %v475 = vmul.f32 %v467, %v387
      %v476 = vmul.f32 %v468, %v388
      %v477 = vmul.f32 %v469, %v389
      %v478 = vmul.f32 %v470, %v390
      %v479 = vmul.f32 %v471, %v391
      %v480 = vmul.f32 %v472, %v392
      %v481 = vmul.f32 %v473, %v393
      %v482 = vmul.f32 %v474, %v394
      %v483 = vadd.f32 %v475, 6.2831855
      %v484 = vadd.f32 %v476, 6.2831855
      %v485 = vadd.f32 %v477, 6.2831855
      %v486 = vadd.f32 %v478, 6.2831855
      %v487 = vadd.f32 %v479, 6.2831855
      %v488 = vadd.f32 %v480, 6.2831855
      %v489 = vadd.f32 %v481, 6.2831855
      %v490 = vadd.f32 %v482, 6.2831855
      %v491 = vmul.f32 %v483, %v379
      %v492 = vmul.f32 %v484, %v380
      %v493 = vmul.f32 %v485, %v381
      %v494 = vmul.f32 %v486, %v382
      %v495 = vmul.f32 %v487, %v383
      %v496 = vmul.f32 %v488, %v384
      %v497 = vmul.f32 %v489, %v385
      %v498 = vmul.f32 %v490, %v386
      %v499 = vld [vmem:[%s2] sm:$0xff]
      %v500 = vld [vmem:[%s2 + $0x8] sm:$0xff]
      %v501 = vld [vmem:[%s2 + $0x10] sm:$0xff]
      %v502 = vld [vmem:[%s2 + $0x18] sm:$0xff]
      %v503 = vld [vmem:[%s5] sm:$0xff]
      %v504 = vld [vmem:[%s5 + $0x8] sm:$0xff]
      %v505 = vld [vmem:[%s5 + $0x10] sm:$0xff]
      %v506 = vld [vmem:[%s5 + $0x18] sm:$0xff]
      %508 = vset.pattern.permute.xlu0 0
      %509 = vperm.xlu0 %508, %v503
      %v510 = vpop.permute.xlu0 %509
      %513 = vset.pattern.permute.xlu0 0
      %514 = vperm.xlu0 %513, %v504
      %v515 = vpop.permute.xlu0 %514
      %518 = vset.pattern.permute.xlu0 0
      %519 = vperm.xlu0 %518, %v505
      %v520 = vpop.permute.xlu0 %519
      %523 = vset.pattern.permute.xlu0 0
      %524 = vperm.xlu0 %523, %v506
      %v525 = vpop.permute.xlu0 %524
      %vm527 = vcmask 261120
      %v529 = vsel %vm527, %v499, 0
      %v532 = vsel %vm527, %v500, 0
      %v535 = vsel %vm527, %v501, 0
      %v538 = vsel %vm527, %v502, 0
      %540 = vmatprep.subr.mxu0 %v492
      %541 = vmatpush1.msra.mxu0 %v491
      %542 = vmatprep.subr.mxu0 %v494
      %543 = vmatpush1.msra.mxu0 %v493
      %544 = vmatprep.subr.mxu0 %v496
      %545 = vmatpush1.msra.mxu0 %v495
      %546 = vmatprep.subr.mxu0 %v498
      %547 = vmatpush1.msra.mxu0 %v497
      %548 = vmatprep.subr.mxu0 0.0
      %549 = vmatpush1.msra.mxu0 0.0
      %550 = vmatprep.subr.mxu0 0.0
      %551 = vmatpush1.msra.mxu0 0.0
      %552 = vmatprep.subr.mxu0 0.0
      %553 = vmatpush1.msra.mxu0 0.0
      %554 = vmatprep.subr.mxu0 0.0
      %555 = vmatpush1.msra.mxu0 0.0
      %556 = vmatprep.subr.mxu0 0.0
      %557 = vmatpush1.msra.mxu0 0.0
      %558 = vmatprep.subr.mxu0 0.0
      %559 = vmatpush1.msra.mxu0 0.0
      %560 = vmatprep.subr.mxu0 0.0
      %561 = vmatpush1.msra.mxu0 0.0
      %562 = vmatprep.subr.mxu0 0.0
      %563 = vmatpush1.msra.mxu0 0.0
      %564 = vmatprep.subr.mxu0 0.0
      %565 = vmatpush1.msra.mxu0 0.0
      %566 = vmatprep.subr.mxu0 0.0
      %567 = vmatpush1.msra.mxu0 0.0
      %568 = vmatprep.subr.mxu0 0.0
      %569 = vmatpush1.msra.mxu0 0.0
      %570 = vmatprep.subr.mxu0 0.0
      %571 = vmatpush1.msra.mxu0 0.0
      %572 = vmatprep.subr.mxu0 0.0
      %573 = vmatpush1.msra.mxu0 0.0
      %574 = vmatprep.subr.mxu0 0.0
      %575 = vmatpush1.msra.mxu0 0.0
      %576 = vmatprep.subr.mxu0 0.0
      %577 = vmatpush1.msra.mxu0 0.0
      %578 = vmatprep.subr.mxu0 0.0
      %579 = vmatpush1.msra.mxu0 0.0
      %580 = vmatprep.subr.mxu0 0.0
      %581 = vmatpush1.msra.mxu0 0.0
      %582 = vmatprep.subr.mxu0 0.0
      %583 = vmatpush1.msra.mxu0 0.0
      %584 = vmatprep.subr.mxu0 0.0
      %585 = vmatpush1.msra.mxu0 0.0
      %586 = vmatprep.subr.mxu0 0.0
      %587 = vmatpush1.msra.mxu0 0.0
      %588 = vmatprep.subr.mxu0 0.0
      %589 = vmatpush1.msra.mxu0 0.0
      %590 = vmatprep.subr.mxu0 0.0
      %591 = vmatpush1.msra.mxu0 0.0
      %592 = vmatprep.subr.mxu0 0.0
      %593 = vmatpush1.msra.mxu0 0.0
      %594 = vmatprep.subr.mxu0 0.0
      %595 = vmatpush1.msra.mxu0 0.0
      %596 = vmatprep.subr.mxu0 0.0
      %597 = vmatpush1.msra.mxu0 0.0
      %598 = vmatprep.subr.mxu0 0.0
      %599 = vmatpush1.msra.mxu0 0.0
      %600 = vmatprep.subr.mxu0 0.0
      %601 = vmatpush1.msra.mxu0 0.0
      %602 = vmatprep.subr.mxu0 0.0
      %603 = vmatpush1.msra.mxu0 0.0
      %604 = vmatprep.mubr.f32.mxu0 0.0
      %605 = vmatmul.mubr.f32.gmra.mrb[0].mxu0 %v529
      %v606 = vpop.f32.mrb[0].mxu0
      %v607 = vadd.f32 %v510, %v606
      %v608 = vpop.f32.mrb[0].mxu0
      %v609 = vadd.f32 %v510, %v608
      %610 = vmatprep.mubr.f32.mxu0 0.0
      %611 = vmatmul.mubr.f32.gmra.mrb[0].mxu0 %v532
      %v612 = vpop.f32.mrb[0].mxu0
      %v613 = vadd.f32 %v515, %v612
      %v614 = vpop.f32.mrb[0].mxu0
      %v615 = vadd.f32 %v515, %v614
      %616 = vmatprep.mubr.f32.mxu0 0.0
      %617 = vmatmul.mubr.f32.gmra.mrb[0].mxu0 %v535
      %v618 = vpop.f32.mrb[0].mxu0
      %v619 = vadd.f32 %v520, %v618
      %v620 = vpop.f32.mrb[0].mxu0
      %v621 = vadd.f32 %v520, %v620
      %622 = vmatprep.mubr.f32.mxu0 0.0
      %623 = vmatmul.mubr.f32.gmra.mrb[0].mxu0 %v538
      %v624 = vpop.f32.mrb[0].mxu0
      %v625 = vadd.f32 %v525, %v624
      %v626 = vpop.f32.mrb[0].mxu0
      %v627 = vadd.f32 %v525, %v626
      %628 = vdwg.mxu0
      %v629 = vadd.f32 %v607, 0.5
      %v630 = vadd.f32 %v609, 0.5
      %v631 = vadd.f32 %v613, 0.5
      %v632 = vadd.f32 %v615, 0.5
      %v633 = vadd.f32 %v619, 0.5
      %v634 = vadd.f32 %v621, 0.5
      %v635 = vadd.f32 %v625, 0.5
      %v636 = vadd.f32 %v627, 0.5
      %v637 = vfloor.f32 %v629
      %v638 = vfloor.f32 %v630
      %v639 = vfloor.f32 %v631
      %v640 = vfloor.f32 %v632
      %v641 = vfloor.f32 %v633
      %v642 = vfloor.f32 %v634
      %v643 = vfloor.f32 %v635
      %v644 = vfloor.f32 %v636
      %v645 = vsub.f32 %v607, %v637
      %v646 = vsub.f32 %v609, %v638
      %v647 = vsub.f32 %v613, %v639
      %v648 = vsub.f32 %v615, %v640
      %v649 = vsub.f32 %v619, %v641
      %v650 = vsub.f32 %v621, %v642
      %v651 = vsub.f32 %v625, %v643
      %v652 = vsub.f32 %v627, %v644
      %v653 = vmul.f32 %v645, %v645
      %v654 = vmul.f32 %v646, %v646
      %v655 = vmul.f32 %v647, %v647
      %v656 = vmul.f32 %v648, %v648
      %v657 = vmul.f32 %v649, %v649
      %v658 = vmul.f32 %v650, %v650
      %v659 = vmul.f32 %v651, %v651
      %v660 = vmul.f32 %v652, %v652
      %v661 = vmul.f32 %v653, 3.199339
      %v662 = vmul.f32 %v654, 3.199339
      %v663 = vmul.f32 %v655, 3.199339
      %v664 = vmul.f32 %v656, 3.199339
      %v665 = vmul.f32 %v657, 3.199339
      %v666 = vmul.f32 %v658, 3.199339
      %v667 = vmul.f32 %v659, 3.199339
      %v668 = vmul.f32 %v660, 3.199339
      %v669 = vadd.f32 %v661, -14.868322
      %v670 = vadd.f32 %v662, -14.868322
      %v671 = vadd.f32 %v663, -14.868322
      %v672 = vadd.f32 %v664, -14.868322
      %v673 = vadd.f32 %v665, -14.868322
      %v674 = vadd.f32 %v666, -14.868322
      %v675 = vadd.f32 %v667, -14.868322
      %v676 = vadd.f32 %v668, -14.868322
      %v677 = vmul.f32 %v669, %v653
      %v678 = vmul.f32 %v670, %v654
      %v679 = vmul.f32 %v671, %v655
      %v680 = vmul.f32 %v672, %v656
      %v681 = vmul.f32 %v673, %v657
      %v682 = vmul.f32 %v674, %v658
      %v683 = vmul.f32 %v675, %v659
      %v684 = vmul.f32 %v676, %v660
      %v685 = vadd.f32 %v677, 42.016075
      %v686 = vadd.f32 %v678, 42.016075
      %v687 = vadd.f32 %v679, 42.016075
      %v688 = vadd.f32 %v680, 42.016075
      %v689 = vadd.f32 %v681, 42.016075
      %v690 = vadd.f32 %v682, 42.016075
      %v691 = vadd.f32 %v683, 42.016075
      %v692 = vadd.f32 %v684, 42.016075
      %v693 = vmul.f32 %v685, %v653
      %v694 = vmul.f32 %v686, %v654
      %v695 = vmul.f32 %v687, %v655
      %v696 = vmul.f32 %v688, %v656
      %v697 = vmul.f32 %v689, %v657
      %v698 = vmul.f32 %v690, %v658
      %v699 = vmul.f32 %v691, %v659
      %v700 = vmul.f32 %v692, %v660
      %v701 = vadd.f32 %v693, -76.70154
      %v702 = vadd.f32 %v694, -76.70154
      %v703 = vadd.f32 %v695, -76.70154
      %v704 = vadd.f32 %v696, -76.70154
      %v705 = vadd.f32 %v697, -76.70154
      %v706 = vadd.f32 %v698, -76.70154
      %v707 = vadd.f32 %v699, -76.70154
      %v708 = vadd.f32 %v700, -76.70154
      %v709 = vmul.f32 %v701, %v653
      %v710 = vmul.f32 %v702, %v654
      %v711 = vmul.f32 %v703, %v655
      %v712 = vmul.f32 %v704, %v656
      %v713 = vmul.f32 %v705, %v657
      %v714 = vmul.f32 %v706, %v658
      %v715 = vmul.f32 %v707, %v659
      %v716 = vmul.f32 %v708, %v660
      %v717 = vadd.f32 %v709, 81.60503
      %v718 = vadd.f32 %v710, 81.60503
      %v719 = vadd.f32 %v711, 81.60503
      %v720 = vadd.f32 %v712, 81.60503
      %v721 = vadd.f32 %v713, 81.60503
      %v722 = vadd.f32 %v714, 81.60503
      %v723 = vadd.f32 %v715, 81.60503
      %v724 = vadd.f32 %v716, 81.60503
      %v725 = vmul.f32 %v717, %v653
      %v726 = vmul.f32 %v718, %v654
      %v727 = vmul.f32 %v719, %v655
      %v728 = vmul.f32 %v720, %v656
      %v729 = vmul.f32 %v721, %v657
      %v730 = vmul.f32 %v722, %v658
      %v731 = vmul.f32 %v723, %v659
      %v732 = vmul.f32 %v724, %v660
      %v733 = vadd.f32 %v725, -41.341698
      %v734 = vadd.f32 %v726, -41.341698
      %v735 = vadd.f32 %v727, -41.341698
      %v736 = vadd.f32 %v728, -41.341698
      %v737 = vadd.f32 %v729, -41.341698
      %v738 = vadd.f32 %v730, -41.341698
      %v739 = vadd.f32 %v731, -41.341698
      %v740 = vadd.f32 %v732, -41.341698
      %v741 = vmul.f32 %v733, %v653
      %v742 = vmul.f32 %v734, %v654
      %v743 = vmul.f32 %v735, %v655
      %v744 = vmul.f32 %v736, %v656
      %v745 = vmul.f32 %v737, %v657
      %v746 = vmul.f32 %v738, %v658
      %v747 = vmul.f32 %v739, %v659
      %v748 = vmul.f32 %v740, %v660
      %v749 = vadd.f32 %v741, 6.2831855
      %v750 = vadd.f32 %v742, 6.2831855
      %v751 = vadd.f32 %v743, 6.2831855
      %v752 = vadd.f32 %v744, 6.2831855
      %v753 = vadd.f32 %v745, 6.2831855
      %v754 = vadd.f32 %v746, 6.2831855
      %v755 = vadd.f32 %v747, 6.2831855
      %v756 = vadd.f32 %v748, 6.2831855
      %v757 = vmul.f32 %v749, %v645
      %v758 = vmul.f32 %v750, %v646
      %v759 = vmul.f32 %v751, %v647
      %v760 = vmul.f32 %v752, %v648
      %v761 = vmul.f32 %v753, %v649
      %v762 = vmul.f32 %v754, %v650
      %v763 = vmul.f32 %v755, %v651
      %v764 = vmul.f32 %v756, %v652
      %s765 = scalar_lea.vmem %s2, 32
      %v766 = vld [vmem:[%s765] sm:$0xff]
      %v767 = vld [vmem:[%s765 + $0x8] sm:$0xff]
      %v768 = vld [vmem:[%s765 + $0x10] sm:$0xff]
      %v769 = vld [vmem:[%s765 + $0x18] sm:$0xff]
      %770 = vset.pattern.permute.xlu0 1
      %771 = vperm.xlu0 %770, %v503
      %v772 = vpop.permute.xlu0 %771
      %774 = vset.pattern.permute.xlu0 1
      %775 = vperm.xlu0 %774, %v504
      %v776 = vpop.permute.xlu0 %775
      %778 = vset.pattern.permute.xlu0 1
      %779 = vperm.xlu0 %778, %v505
      %v780 = vpop.permute.xlu0 %779
      %782 = vset.pattern.permute.xlu0 1
      %783 = vperm.xlu0 %782, %v506
      %v784 = vpop.permute.xlu0 %783
      %v787 = vsel %vm527, %v766, 0
      %v790 = vsel %vm527, %v767, 0
      %v793 = vsel %vm527, %v768, 0
      %v796 = vsel %vm527, %v769, 0
      %798 = vmatprep.subr.mxu0 %v758
      %799 = vmatpush1.msra.mxu0 %v757
      %800 = vmatprep.subr.mxu0 %v760
      %801 = vmatpush1.msra.mxu0 %v759
      %802 = vmatprep.subr.mxu0 %v762
      %803 = vmatpush1.msra.mxu0 %v761
      %804 = vmatprep.subr.mxu0 %v764
      %805 = vmatpush1.msra.mxu0 %v763
      %806 = vmatprep.subr.mxu0 0.0
      %807 = vmatpush1.msra.mxu0 0.0
      %808 = vmatprep.subr.mxu0 0.0
      %809 = vmatpush1.msra.mxu0 0.0
      %810 = vmatprep.subr.mxu0 0.0
      %811 = vmatpush1.msra.mxu0 0.0
      %812 = vmatprep.subr.mxu0 0.0
      %813 = vmatpush1.msra.mxu0 0.0
      %814 = vmatprep.subr.mxu0 0.0
      %815 = vmatpush1.msra.mxu0 0.0
      %816 = vmatprep.subr.mxu0 0.0
      %817 = vmatpush1.msra.mxu0 0.0
      %818 = vmatprep.subr.mxu0 0.0
      %819 = vmatpush1.msra.mxu0 0.0
      %820 = vmatprep.subr.mxu0 0.0
      %821 = vmatpush1.msra.mxu0 0.0
      %822 = vmatprep.subr.mxu0 0.0
      %823 = vmatpush1.msra.mxu0 0.0
      %824 = vmatprep.subr.mxu0 0.0
      %825 = vmatpush1.msra.mxu0 0.0
      %826 = vmatprep.subr.mxu0 0.0
      %827 = vmatpush1.msra.mxu0 0.0
      %828 = vmatprep.subr.mxu0 0.0
      %829 = vmatpush1.msra.mxu0 0.0
      %830 = vmatprep.subr.mxu0 0.0
      %831 = vmatpush1.msra.mxu0 0.0
      %832 = vmatprep.subr.mxu0 0.0
      %833 = vmatpush1.msra.mxu0 0.0
      %834 = vmatprep.subr.mxu0 0.0
      %835 = vmatpush1.msra.mxu0 0.0
      %836 = vmatprep.subr.mxu0 0.0
      %837 = vmatpush1.msra.mxu0 0.0
      %838 = vmatprep.subr.mxu0 0.0
      %839 = vmatpush1.msra.mxu0 0.0
      %840 = vmatprep.subr.mxu0 0.0
      %841 = vmatpush1.msra.mxu0 0.0
      %842 = vmatprep.subr.mxu0 0.0
      %843 = vmatpush1.msra.mxu0 0.0
      %844 = vmatprep.subr.mxu0 0.0
      %845 = vmatpush1.msra.mxu0 0.0
      %846 = vmatprep.subr.mxu0 0.0
      %847 = vmatpush1.msra.mxu0 0.0
      %848 = vmatprep.subr.mxu0 0.0
      %849 = vmatpush1.msra.mxu0 0.0
      %850 = vmatprep.subr.mxu0 0.0
      %851 = vmatpush1.msra.mxu0 0.0
      %852 = vmatprep.subr.mxu0 0.0
      %853 = vmatpush1.msra.mxu0 0.0
      %854 = vmatprep.subr.mxu0 0.0
      %855 = vmatpush1.msra.mxu0 0.0
      %856 = vmatprep.subr.mxu0 0.0
      %857 = vmatpush1.msra.mxu0 0.0
      %858 = vmatprep.subr.mxu0 0.0
      %859 = vmatpush1.msra.mxu0 0.0
      %860 = vmatprep.subr.mxu0 0.0
      %861 = vmatpush1.msra.mxu0 0.0
      %862 = vmatprep.mubr.f32.mxu0 0.0
      %863 = vmatmul.mubr.f32.gmra.mrb[0].mxu0 %v787
      %v864 = vpop.f32.mrb[0].mxu0
      %v865 = vadd.f32 %v772, %v864
      %v866 = vpop.f32.mrb[0].mxu0
      %v867 = vadd.f32 %v772, %v866
      %868 = vmatprep.mubr.f32.mxu0 0.0
      %869 = vmatmul.mubr.f32.gmra.mrb[0].mxu0 %v790
      %v870 = vpop.f32.mrb[0].mxu0
      %v871 = vadd.f32 %v776, %v870
      %v872 = vpop.f32.mrb[0].mxu0
      %v873 = vadd.f32 %v776, %v872
      %874 = vmatprep.mubr.f32.mxu0 0.0
      %875 = vmatmul.mubr.f32.gmra.mrb[0].mxu0 %v793
      %v876 = vpop.f32.mrb[0].mxu0
      %v877 = vadd.f32 %v780, %v876
      %v878 = vpop.f32.mrb[0].mxu0
      %v879 = vadd.f32 %v780, %v878
      %880 = vmatprep.mubr.f32.mxu0 0.0
      %881 = vmatmul.mubr.f32.gmra.mrb[0].mxu0 %v796
      %v882 = vpop.f32.mrb[0].mxu0
      %v883 = vadd.f32 %v784, %v882
      %v884 = vpop.f32.mrb[0].mxu0
      %v885 = vadd.f32 %v784, %v884
      %886 = vdwg.mxu0
      %v887 = vadd.f32 %v865, 0.5
      %v888 = vadd.f32 %v867, 0.5
      %v889 = vadd.f32 %v871, 0.5
      %v890 = vadd.f32 %v873, 0.5
      %v891 = vadd.f32 %v877, 0.5
      %v892 = vadd.f32 %v879, 0.5
      %v893 = vadd.f32 %v883, 0.5
      %v894 = vadd.f32 %v885, 0.5
      %v895 = vfloor.f32 %v887
      %v896 = vfloor.f32 %v888
      %v897 = vfloor.f32 %v889
      %v898 = vfloor.f32 %v890
      %v899 = vfloor.f32 %v891
      %v900 = vfloor.f32 %v892
      %v901 = vfloor.f32 %v893
      %v902 = vfloor.f32 %v894
      %v903 = vsub.f32 %v865, %v895
      %v904 = vsub.f32 %v867, %v896
      %v905 = vsub.f32 %v871, %v897
      %v906 = vsub.f32 %v873, %v898
      %v907 = vsub.f32 %v877, %v899
      %v908 = vsub.f32 %v879, %v900
      %v909 = vsub.f32 %v883, %v901
      %v910 = vsub.f32 %v885, %v902
      %v911 = vmul.f32 %v903, %v903
      %v912 = vmul.f32 %v904, %v904
      %v913 = vmul.f32 %v905, %v905
      %v914 = vmul.f32 %v906, %v906
      %v915 = vmul.f32 %v907, %v907
      %v916 = vmul.f32 %v908, %v908
      %v917 = vmul.f32 %v909, %v909
      %v918 = vmul.f32 %v910, %v910
      %v919 = vmul.f32 %v911, 3.199339
      %v920 = vmul.f32 %v912, 3.199339
      %v921 = vmul.f32 %v913, 3.199339
      %v922 = vmul.f32 %v914, 3.199339
      %v923 = vmul.f32 %v915, 3.199339
      %v924 = vmul.f32 %v916, 3.199339
      %v925 = vmul.f32 %v917, 3.199339
      %v926 = vmul.f32 %v918, 3.199339
      %v927 = vadd.f32 %v919, -14.868322
      %v928 = vadd.f32 %v920, -14.868322
      %v929 = vadd.f32 %v921, -14.868322
      %v930 = vadd.f32 %v922, -14.868322
      %v931 = vadd.f32 %v923, -14.868322
      %v932 = vadd.f32 %v924, -14.868322
      %v933 = vadd.f32 %v925, -14.868322
      %v934 = vadd.f32 %v926, -14.868322
      %v935 = vmul.f32 %v927, %v911
      %v936 = vmul.f32 %v928, %v912
      %v937 = vmul.f32 %v929, %v913
      %v938 = vmul.f32 %v930, %v914
      %v939 = vmul.f32 %v931, %v915
      %v940 = vmul.f32 %v932, %v916
      %v941 = vmul.f32 %v933, %v917
      %v942 = vmul.f32 %v934, %v918
      %v943 = vadd.f32 %v935, 42.016075
      %v944 = vadd.f32 %v936, 42.016075
      %v945 = vadd.f32 %v937, 42.016075
      %v946 = vadd.f32 %v938, 42.016075
      %v947 = vadd.f32 %v939, 42.016075
      %v948 = vadd.f32 %v940, 42.016075
      %v949 = vadd.f32 %v941, 42.016075
      %v950 = vadd.f32 %v942, 42.016075
      %v951 = vmul.f32 %v943, %v911
      %v952 = vmul.f32 %v944, %v912
      %v953 = vmul.f32 %v945, %v913
      %v954 = vmul.f32 %v946, %v914
      %v955 = vmul.f32 %v947, %v915
      %v956 = vmul.f32 %v948, %v916
      %v957 = vmul.f32 %v949, %v917
      %v958 = vmul.f32 %v950, %v918
      %v959 = vadd.f32 %v951, -76.70154
      %v960 = vadd.f32 %v952, -76.70154
      %v961 = vadd.f32 %v953, -76.70154
      %v962 = vadd.f32 %v954, -76.70154
      %v963 = vadd.f32 %v955, -76.70154
      %v964 = vadd.f32 %v956, -76.70154
      %v965 = vadd.f32 %v957, -76.70154
      %v966 = vadd.f32 %v958, -76.70154
      %v967 = vmul.f32 %v959, %v911
      %v968 = vmul.f32 %v960, %v912
      %v969 = vmul.f32 %v961, %v913
      %v970 = vmul.f32 %v962, %v914
      %v971 = vmul.f32 %v963, %v915
      %v972 = vmul.f32 %v964, %v916
      %v973 = vmul.f32 %v965, %v917
      %v974 = vmul.f32 %v966, %v918
      %v975 = vadd.f32 %v967, 81.60503
      %v976 = vadd.f32 %v968, 81.60503
      %v977 = vadd.f32 %v969, 81.60503
      %v978 = vadd.f32 %v970, 81.60503
      %v979 = vadd.f32 %v971, 81.60503
      %v980 = vadd.f32 %v972, 81.60503
      %v981 = vadd.f32 %v973, 81.60503
      %v982 = vadd.f32 %v974, 81.60503
      %v983 = vmul.f32 %v975, %v911
      %v984 = vmul.f32 %v976, %v912
      %v985 = vmul.f32 %v977, %v913
      %v986 = vmul.f32 %v978, %v914
      %v987 = vmul.f32 %v979, %v915
      %v988 = vmul.f32 %v980, %v916
      %v989 = vmul.f32 %v981, %v917
      %v990 = vmul.f32 %v982, %v918
      %v991 = vadd.f32 %v983, -41.341698
      %v992 = vadd.f32 %v984, -41.341698
      %v993 = vadd.f32 %v985, -41.341698
      %v994 = vadd.f32 %v986, -41.341698
      %v995 = vadd.f32 %v987, -41.341698
      %v996 = vadd.f32 %v988, -41.341698
      %v997 = vadd.f32 %v989, -41.341698
      %v998 = vadd.f32 %v990, -41.341698
      %v999 = vmul.f32 %v991, %v911
      %v1000 = vmul.f32 %v992, %v912
      %v1001 = vmul.f32 %v993, %v913
      %v1002 = vmul.f32 %v994, %v914
      %v1003 = vmul.f32 %v995, %v915
      %v1004 = vmul.f32 %v996, %v916
      %v1005 = vmul.f32 %v997, %v917
      %v1006 = vmul.f32 %v998, %v918
      %v1007 = vadd.f32 %v999, 6.2831855
      %v1008 = vadd.f32 %v1000, 6.2831855
      %v1009 = vadd.f32 %v1001, 6.2831855
      %v1010 = vadd.f32 %v1002, 6.2831855
      %v1011 = vadd.f32 %v1003, 6.2831855
      %v1012 = vadd.f32 %v1004, 6.2831855
      %v1013 = vadd.f32 %v1005, 6.2831855
      %v1014 = vadd.f32 %v1006, 6.2831855
      %v1015 = vmul.f32 %v1007, %v903
      %v1016 = vmul.f32 %v1008, %v904
      %v1017 = vmul.f32 %v1009, %v905
      %v1018 = vmul.f32 %v1010, %v906
      %v1019 = vmul.f32 %v1011, %v907
      %v1020 = vmul.f32 %v1012, %v908
      %v1021 = vmul.f32 %v1013, %v909
      %v1022 = vmul.f32 %v1014, %v910
      %v1023 = vld [vmem:[%s3] sm:$0x7]
      %v1024 = vld [vmem:[%s4] sm:$0x7]
      %1026 = vset.pattern.permute.xlu0 0
      %1027 = vperm.xlu0 %1026, %v1024
      %v1028 = vpop.permute.xlu0 %1027
      %v1031 = vsel %vm527, %v1023, 0
      %1033 = vmatprep.subr.mxu0 %v1016
      %1034 = vmatpush1.msra.mxu0 %v1015
      %1035 = vmatprep.subr.mxu0 %v1018
      %1036 = vmatpush1.msra.mxu0 %v1017
      %1037 = vmatprep.subr.mxu0 %v1020
      %1038 = vmatpush1.msra.mxu0 %v1019
      %1039 = vmatprep.subr.mxu0 %v1022
      %1040 = vmatpush1.msra.mxu0 %v1021
      %1041 = vmatprep.subr.mxu0 0.0
      %1042 = vmatpush1.msra.mxu0 0.0
      %1043 = vmatprep.subr.mxu0 0.0
      %1044 = vmatpush1.msra.mxu0 0.0
      %1045 = vmatprep.subr.mxu0 0.0
      %1046 = vmatpush1.msra.mxu0 0.0
      %1047 = vmatprep.subr.mxu0 0.0
      %1048 = vmatpush1.msra.mxu0 0.0
      %1049 = vmatprep.subr.mxu0 0.0
      %1050 = vmatpush1.msra.mxu0 0.0
      %1051 = vmatprep.subr.mxu0 0.0
      %1052 = vmatpush1.msra.mxu0 0.0
      %1053 = vmatprep.subr.mxu0 0.0
      %1054 = vmatpush1.msra.mxu0 0.0
      %1055 = vmatprep.subr.mxu0 0.0
      %1056 = vmatpush1.msra.mxu0 0.0
      %1057 = vmatprep.subr.mxu0 0.0
      %1058 = vmatpush1.msra.mxu0 0.0
      %1059 = vmatprep.subr.mxu0 0.0
      %1060 = vmatpush1.msra.mxu0 0.0
      %1061 = vmatprep.subr.mxu0 0.0
      %1062 = vmatpush1.msra.mxu0 0.0
      %1063 = vmatprep.subr.mxu0 0.0
      %1064 = vmatpush1.msra.mxu0 0.0
      %1065 = vmatprep.subr.mxu0 0.0
      %1066 = vmatpush1.msra.mxu0 0.0
      %1067 = vmatprep.subr.mxu0 0.0
      %1068 = vmatpush1.msra.mxu0 0.0
      %1069 = vmatprep.subr.mxu0 0.0
      %1070 = vmatpush1.msra.mxu0 0.0
      %1071 = vmatprep.subr.mxu0 0.0
      %1072 = vmatpush1.msra.mxu0 0.0
      %1073 = vmatprep.subr.mxu0 0.0
      %1074 = vmatpush1.msra.mxu0 0.0
      %1075 = vmatprep.subr.mxu0 0.0
      %1076 = vmatpush1.msra.mxu0 0.0
      %1077 = vmatprep.subr.mxu0 0.0
      %1078 = vmatpush1.msra.mxu0 0.0
      %1079 = vmatprep.subr.mxu0 0.0
      %1080 = vmatpush1.msra.mxu0 0.0
      %1081 = vmatprep.subr.mxu0 0.0
      %1082 = vmatpush1.msra.mxu0 0.0
      %1083 = vmatprep.subr.mxu0 0.0
      %1084 = vmatpush1.msra.mxu0 0.0
      %1085 = vmatprep.subr.mxu0 0.0
      %1086 = vmatpush1.msra.mxu0 0.0
      %1087 = vmatprep.subr.mxu0 0.0
      %1088 = vmatpush1.msra.mxu0 0.0
      %1089 = vmatprep.subr.mxu0 0.0
      %1090 = vmatpush1.msra.mxu0 0.0
      %1091 = vmatprep.subr.mxu0 0.0
      %1092 = vmatpush1.msra.mxu0 0.0
      %1093 = vmatprep.subr.mxu0 0.0
      %1094 = vmatpush1.msra.mxu0 0.0
      %1095 = vmatprep.subr.mxu0 0.0
      %1096 = vmatpush1.msra.mxu0 0.0
      %1097 = vmatprep.mubr.f32.mxu0 0.0
      %1098 = vmatmul.mubr.f32.gmra.mrb[0].mxu0 %v1031
      %v1099 = vpop.f32.mrb[0].mxu0
      %v1100 = vadd.f32 %v1028, %v1099
      %v1101 = vpop.f32.mrb[0].mxu0
      %v1102 = vadd.f32 %v1028, %v1101
      %1103 = vdwg.mxu0
      %v1106 = vcombine.low %v1100, %v1102
      %1108 = vst [vmem:[%s253] sm:$0x77] %v1106
      %s1109 = smul.u32 2, %s17
      %p1110 = scmp.lt.s32.totalorder %s1109, 7
      %s1111 = scalar_select %p1110, %s1109, 7
      %s1112 = smul.addr %s1111, 4
      %s1113 = scalar_lea.vmem %s6, %s1112
      // Predicated region
      $region45: #{siren_film_forward.1} parent=43 // pred_check
        %p1114 = pneg %p166
      $region46: #{siren_film_forward.1} parent=43 // pred_check_branch
        %1116 = sbr.rel (%p1114) target = $region48
      $region47: #{siren_film_forward.1} parent=43 // pred_region
        %s1117 = smul.u32 2, %s17
      $region48: #{siren_film_forward.1} parent=43 // pred_fallthru
        _
    $region44: #{siren_film_forward.1} parent=5 // pred_fallthru
      _
    %p1118 = scmp.le.s32.totalorder 2, %s12
    // Predicated region
    $region49: #{siren_film_forward.1} parent=5 // pred_check
      %p1119 = pneg %p1118
    $region50: #{siren_film_forward.1} parent=5 // pred_check_branch
      %1121 = sbr.rel (%p1119) target = $region52
    $region51: #{siren_film_forward.1} parent=5 // pred_region
      %s1122 = ssub.s32 %s12, 2
      // Predicated region
      $region53: #{siren_film_forward.1} parent=51 // pred_check
        %p1123 = pneg %p172
      $region54: #{siren_film_forward.1} parent=51 // pred_check_branch
        %1125 = sbr.rel (%p1123) target = $region56
      $region55: #{siren_film_forward.1} parent=51 // pred_region
        %s1126 = smul.u32 2, %s18
        %p1127 = scmp.lt.s32.totalorder %s1126, 7
        %s1128 = scalar_select %p1127, %s1126, 7
        %s1129 = smul.addr %s1128, 4
        %s1130 = scalar_lea.vmem %s6, %s1129
      $region56: #{siren_film_forward.1} parent=51 // pred_fallthru
        _
    $region52: #{siren_film_forward.1} parent=5 // pred_fallthru
      _
  $region6: #{siren_film_forward.1} parent=0 // loop_footer
    %s16 = sadd.s32 1, %s12
  $region7: #{siren_film_forward.1} parent=0 // loop_footer_branch
    %11 = sbr.rel target = $region3
  $region8: #{siren_film_forward.1} parent=0 // loop_exit
    _

</llo_original>
